<compile_context>
chip_gen: v7x
topology: tpu7x:2x2x1
jax: 0.10.0
libtpu: 0.0.40
codegen_flags: <defaults>
</compile_context>

<pallas_src>
import jax
import jax.numpy as jnp
from jax import lax
from jax.experimental import pallas as pl
from jax.experimental.pallas import tpu as pltpu

IN_F = 5    # input features
HID = 20    # hidden width


def _round_up(x, m):
    return (x + m - 1) // m * m


def mlp_kernel(xT_ref, w1T_ref, b1_ref, w2_ref, b2_ref, o_ref):
    xT = xT_ref[...]            # (5, TB)   batch on the 128-lane axis
    w1T = w1T_ref[...]          # (20, 5)
    b1 = b1_ref[...]            # (20, 1)
    w2 = w2_ref[...]            # (20, 1)
    b2 = b2_ref[...]            # (1, 1)

    # Layer 1 on the MXU: h = W1^T x, (20,5) @ (5,TB) -> (20,TB), f32 accum.
    h = jnp.dot(w1T, xT,
                preferred_element_type=jnp.float32,
                precision=lax.Precision.HIGHEST)
    h = jnp.maximum(h + b1, 0.0)                                  # VPU

    # Layer 2: 20-term multiply + sublane reduce (VPU + XLU), lane-dense out.
    out = jnp.sum(w2 * h, axis=0, keepdims=True) + b2             # (1, TB)
    o_ref[...] = out.astype(o_ref.dtype)


def mlp_regression(x, w1, b1, w2, b2, *, tile_b=32768):
    """x: (B, 5) f32; w1: (5, 20); b1: (1, 20); w2: (20, 1); b2: (1, 1).

    Returns (B,) f32 — matches the PyTorch module's output[:, 0].
    """
    B = x.shape[0]
    b128 = _round_up(B, 128)

    # Lane-aligned batch tile; don't over-tile tiny batches.
    tile = min(_round_up(tile_b, 128), b128)
    # v7x: keep >= 2 grid steps so ("parallel",) can feed the second
    # TensorCore; no effect on v5e/v6e (1 TC) or when B already spans many
    # tiles (the cap only bites when one tile would cover the whole batch).
    if b128 >= 256:
        tile = min(tile, _round_up((b128 + 1) // 2, 128))

    padded_B = _round_up(B, tile)
    n_tiles = padded_B // tile

    # Wrapper-side layout plumbing: pad batch to a tile multiple and put
    # batch on the lane axis.  allow_input_fusion below lets XLA fuse this
    # pad/transpose into the pallas_call input instead of materializing it.
    if padded_B != B:
        x = jnp.pad(x, ((0, padded_B - B), (0, 0)))
    xT = x.T                          # (5, padded_B)
    w1T = w1.T                        # (20, 5)  -> h = W1^T x
    b1c = b1.reshape(HID, 1)          # (20, 1)
    w2c = w2.reshape(HID, 1)          # (20, 1)
    b2c = b2.reshape(1, 1)            # (1, 1)

    const = lambda i: (0, 0)          # weights stay resident; no per-step DMA
    cost = pl.CostEstimate(
        flops=2 * padded_B * IN_F * HID + 2 * padded_B * HID,
        transcendentals=0,
        bytes_accessed=padded_B * (IN_F + 1) * 4
        + (IN_F * HID + 2 * HID + 1) * 4,
    )

    out = pl.pallas_call(
        mlp_kernel,
        out_shape=jax.ShapeDtypeStruct((1, padded_B), jnp.float32),
        grid=(n_tiles,),
        in_specs=[
            pl.BlockSpec((IN_F, tile), lambda i: (0, i)),   # x tile, lane-dense
            pl.BlockSpec((HID, IN_F), const),               # W1^T
            pl.BlockSpec((HID, 1), const),                  # b1
            pl.BlockSpec((HID, 1), const),                  # w2
            pl.BlockSpec((1, 1), const),                    # b2
        ],
        out_specs=pl.BlockSpec((1, tile), lambda i: (0, i)),
        compiler_params=pltpu.CompilerParams(
            dimension_semantics=("parallel",),      # 2x on v7x dual TC
            vmem_limit_bytes=32 * 1024 * 1024,      # <=~6 MB used at 32K lanes
            allow_input_fusion=[True, False, False, False, False],
        ),
        cost_estimate=cost,
    )(xT, w1T, b1c, w2c, b2c)

    # Lane-dense (1, padded_B) -> (B,).  Note: padded lanes hold
    # relu(b1)·w2 + b2 and are sliced off here.
    return out[0, :B]


def init_params(key):
    """Deterministic param init matching nn.Linear shapes (Kaiming-uniform-ish)."""
    k1, k2, k3, k4 = jax.random.split(key, 4)
    bound1 = 1.0 / jnp.sqrt(IN_F)
    bound2 = 1.0 / jnp.sqrt(HID)
    # Stored as (in, out): forward is x @ W + b (== PyTorch x @ W.T + b).
    w1 = jax.random.uniform(k1, (IN_F, HID), jnp.float32, -bound1, bound1)
    b1 = jax.random.uniform(k2, (1, HID), jnp.float32, -bound1, bound1)
    w2 = jax.random.uniform(k3, (HID, 1), jnp.float32, -bound2, bound2)
    b2 = jax.random.uniform(k4, (1, 1), jnp.float32, -bound2, bound2)
    return w1, b1, w2, b2


def _reference(x, w1, b1, w2, b2):
    h = jnp.maximum(
        jnp.dot(x, w1, precision=lax.Precision.HIGHEST) + b1, 0.0)
    return (jnp.dot(h, w2, precision=lax.Precision.HIGHEST) + b2)[:, 0]


if __name__ == "__main__":
    key = jax.random.PRNGKey(0)
    kx, kx2, kx3, kp = jax.random.split(key, 4)
    w1, b1, w2, b2 = init_params(kp)

    # Small batch (single tile).
    B = 8
    x = jax.random.normal(kx, (B, IN_F), jnp.float32)
    y = mlp_regression(x, w1, b1, w2, b2)
    jax.block_until_ready(y)
    assert y.shape == (B,)
    assert jnp.allclose(y, _reference(x, w1, b1, w2, b2), atol=1e-5, rtol=1e-5)

    # Ragged batch exercising the grid + padding path (3 tiles of 128).
    B2 = 300
    x2 = jax.random.normal(kx2, (B2, IN_F), jnp.float32)
    y2 = mlp_regression(x2, w1, b1, w2, b2, tile_b=128)
    jax.block_until_ready(y2)
    assert y2.shape == (B2,)
    assert jnp.allclose(y2, _reference(x2, w1, b1, w2, b2), atol=1e-5, rtol=1e-5)

    # Default big-tile path with the v7x >=2-grid-step cap (2 tiles of 1536).
    B3 = 3000
    x3 = jax.random.normal(kx3, (B3, IN_F), jnp.float32)
    y3 = mlp_regression(x3, w1, b1, w2, b2)
    jax.block_until_ready(y3)
    assert y3.shape == (B3,)
    assert jnp.allclose(y3, _reference(x3, w1, b1, w2, b2), atol=1e-5, rtol=1e-5)

    print("KERNEL_OK")
</pallas_src>

<mosaic_0001>
module attributes {stable_mosaic.version = 11 : i64} {
  func.func @mlp_kernel(%arg0: i32, %arg1: memref<5x128xf32, #tpu.memory_space<vmem>>, %arg2: memref<20x5xf32, #tpu.memory_space<vmem>>, %arg3: memref<20x1xf32, #tpu.memory_space<vmem>>, %arg4: memref<20x1xf32, #tpu.memory_space<vmem>>, %arg5: memref<1x1xf32, #tpu.memory_space<vmem>>, %arg6: memref<1x128xf32, #tpu.memory_space<vmem>>) attributes {dimension_semantics = [#tpu.dimension_semantics<parallel>], iteration_bounds = array<i64: 1>, scalar_prefetch = 0 : i64, scratch_operands = 0 : i64, tpu.core_type = #tpu.core_type<tc>, window_params = [{transform_indices = @transform_0, window_bounds = array<i64: 5, 128>}, {pipeline_mode = #tpu.pipeline_mode<synchronous>, transform_indices = @transform_1, window_bounds = array<i64: 20, 5>}, {pipeline_mode = #tpu.pipeline_mode<synchronous>, transform_indices = @transform_2, window_bounds = array<i64: 20, 1>}, {pipeline_mode = #tpu.pipeline_mode<synchronous>, transform_indices = @transform_3, window_bounds = array<i64: 20, 1>}, {pipeline_mode = #tpu.pipeline_mode<synchronous>, transform_indices = @transform_4, window_bounds = array<i64: 1, 1>}, {transform_indices = @transform_5, window_bounds = array<i64: 1, 128>}]} {
    %c0 = arith.constant 0 : index
    %c0_0 = arith.constant 0 : index
    %0 = vector.load %arg1[%c0, %c0_0] : memref<5x128xf32, #tpu.memory_space<vmem>>, vector<5x128xf32>
    %c0_1 = arith.constant 0 : index
    %c0_2 = arith.constant 0 : index
    %1 = vector.load %arg2[%c0_1, %c0_2] : memref<20x5xf32, #tpu.memory_space<vmem>>, vector<20x5xf32>
    %c0_3 = arith.constant 0 : index
    %c0_4 = arith.constant 0 : index
    %2 = vector.load %arg3[%c0_3, %c0_4] : memref<20x1xf32, #tpu.memory_space<vmem>>, vector<20x1xf32>
    %c0_5 = arith.constant 0 : index
    %c0_6 = arith.constant 0 : index
    %3 = vector.load %arg4[%c0_5, %c0_6] : memref<20x1xf32, #tpu.memory_space<vmem>>, vector<20x1xf32>
    %c0_7 = arith.constant 0 : index
    %c0_8 = arith.constant 0 : index
    %4 = vector.load %arg5[%c0_7, %c0_8] : memref<1x1xf32, #tpu.memory_space<vmem>>, vector<1x1xf32>
    %cst = arith.constant dense<0.000000e+00> : vector<20x128xf32>
    %5 = tpu.matmul %1, %0, %cst {dimension_numbers = #tpu.dot_dimension_numbers<[1], [0], [0], [1], [0, 0, 1, 1], [], []>, precision = #tpu.contract_precision<fp32>} : vector<20x5xf32>, vector<5x128xf32>, vector<20x128xf32> -> vector<20x128xf32>
    %6 = vector.broadcast %2 : vector<20x1xf32> to vector<20x128xf32>
    %7 = arith.addf %5, %6 : vector<20x128xf32>
    %cst_9 = arith.constant 0.000000e+00 : f32
    %8 = vector.broadcast %cst_9 : f32 to vector<20x128xf32>
    %9 = arith.maximumf %7, %8 : vector<20x128xf32>
    %10 = vector.broadcast %3 : vector<20x1xf32> to vector<20x128xf32>
    %11 = arith.mulf %10, %9 : vector<20x128xf32>
    %cst_10 = arith.constant dense<0.000000e+00> : vector<128xf32>
    %12 = vector.multi_reduction <add>, %11, %cst_10 [0] : vector<20x128xf32> to vector<128xf32>
    %13 = vector.shape_cast %12 : vector<128xf32> to vector<1x128xf32>
    %14 = vector.broadcast %4 : vector<1x1xf32> to vector<1x128xf32>
    %15 = arith.addf %13, %14 : vector<1x128xf32>
    %c0_11 = arith.constant 0 : index
    %c0_12 = arith.constant 0 : index
    %16 = vector.load %arg6[%c0_11, %c0_12] : memref<1x128xf32, #tpu.memory_space<vmem>>, vector<1x128xf32>
    tpu.vector_store %arg6[%c0_11, %c0_12], %15 {strides = array<i32>} : memref<1x128xf32, #tpu.memory_space<vmem>>, vector<1x128xf32>,
    return
  }
  func.func @transform_0(%arg0: i32) -> (i32, i32) {
    %c0_i32 = arith.constant 0 : i32
    %c0_i32_0 = arith.constant 0 : i32
    return %c0_i32, %arg0 : i32, i32
  }
  func.func @transform_1(%arg0: i32) -> (i32, i32) {
    %c0_i32 = arith.constant 0 : i32
    %c0_i32_0 = arith.constant 0 : i32
    %c0_i32_1 = arith.constant 0 : i32
    return %c0_i32, %c0_i32_0 : i32, i32
  }
  func.func @transform_2(%arg0: i32) -> (i32, i32) {
    %c0_i32 = arith.constant 0 : i32
    %c0_i32_0 = arith.constant 0 : i32
    %c0_i32_1 = arith.constant 0 : i32
    return %c0_i32, %c0_i32_0 : i32, i32
  }
  func.func @transform_3(%arg0: i32) -> (i32, i32) {
    %c0_i32 = arith.constant 0 : i32
    %c0_i32_0 = arith.constant 0 : i32
    %c0_i32_1 = arith.constant 0 : i32
    return %c0_i32, %c0_i32_0 : i32, i32
  }
  func.func @transform_4(%arg0: i32) -> (i32, i32) {
    %c0_i32 = arith.constant 0 : i32
    %c0_i32_0 = arith.constant 0 : i32
    %c0_i32_1 = arith.constant 0 : i32
    return %c0_i32, %c0_i32_0 : i32, i32
  }
  func.func @transform_5(%arg0: i32) -> (i32, i32) {
    %c0_i32 = arith.constant 0 : i32
    %c0_i32_0 = arith.constant 0 : i32
    return %c0_i32, %arg0 : i32, i32
  }
}

</mosaic_0001>

<llo_original>
// kernel: tpu_custom_call.1
$region0: #{tpu_custom_call.1}
  #allocation0 [shape = 'u32[]', space=smem, size = 0x4, offset = 0x4, fixed_abs, tag = 'smem constant byte address 0x4 - core index']
  #allocation1 [shape = 'u32[144,128]{1,0:T(1,128)}', space=vmem, size = 0x12000, scoped, tag = 'internal scratch']
  #allocation2 [shape = 'f32[1,1]{1,0:T(1,128)S(1)}', space=vmem, size = 0x200, scoped, tag = 'scoped memory for tpu_custom_call.1']
  %s0 = inlined_call_operand.vmem [shape: f32[5,128], index: 0, kind: input, shape index: {}]
  %s1 = inlined_call_operand.vmem [shape: f32[20,5], index: 1, kind: input, shape index: {}]
  %s2 = inlined_call_operand.vmem [shape: f32[20,1], index: 2, kind: input, shape index: {}]
  %s3 = inlined_call_operand.vmem [shape: f32[20,1], index: 3, kind: input, shape index: {}]
  %s4 = inlined_call_operand.<no memory space> [shape: f32[1,1], index: 4, kind: input, shape index: {}]
  %s5 = inlined_call_operand.hbm [shape: f32[1,128], index: 5, kind: output, shape index: {}]
  %s6 = sld [smem:[#allocation0]]
  $region30: #{tpu_custom_call.1} parent=0
    _
  %s8 = ssub.s32 1, %s6
  %s9 = scalar_select 0, %s8, %s6
  %v10 = vstv %s4
  %11 = vst [vmem:[#allocation2] sm:$0x1] %v10
  $region1: #{tpu_custom_call.1} parent=0
    #allocation3 [shape = 'u8[512]{0}', space=vmem, size = 0x400, scoped, tag = 'output window, operand 0, single buffered']
    #allocation4 [shape = 's32[1]{0}', space=sflag, size = 0x4, scoped, tag = 'scoped memory for tpu_custom_call.1']
    %12 = vsyncpa [#allocation4], 0
    // Predicated region
    $region2: #{tpu_custom_call.1} parent=1 // pred_check
      _
    $region3: #{tpu_custom_call.1} parent=1 // pred_check_branch
      %14 = sbr.rel (0) target = $region5
    $region4: #{tpu_custom_call.1} parent=1 // pred_region
      _
    $region5: #{tpu_custom_call.1} parent=1 // pred_fallthru
      _
    // Predicated region
    $region6: #{tpu_custom_call.1} parent=1 // pred_check
      _
    $region7: #{tpu_custom_call.1} parent=1 // pred_check_branch
      %16 = sbr.rel (0) target = $region9
    $region8: #{tpu_custom_call.1} parent=1 // pred_region
      _
    $region9: #{tpu_custom_call.1} parent=1 // pred_fallthru
      _
    // Predicated region
    $region10: #{tpu_custom_call.1} parent=1 // pred_check
      _
    $region11: #{tpu_custom_call.1} parent=1 // pred_check_branch
      %18 = sbr.rel (0) target = $region13
    $region12: #{tpu_custom_call.1} parent=1 // pred_region
      _
    $region13: #{tpu_custom_call.1} parent=1 // pred_fallthru
      _
    // Predicated region
    $region14: #{tpu_custom_call.1} parent=1 // pred_check
      _
    $region15: #{tpu_custom_call.1} parent=1 // pred_check_branch
      %20 = sbr.rel (0) target = $region17
    $region16: #{tpu_custom_call.1} parent=1 // pred_region
      _
    $region17: #{tpu_custom_call.1} parent=1 // pred_fallthru
      _
    // Predicated region
    $region18: #{tpu_custom_call.1} parent=1 // pred_check
      _
    $region19: #{tpu_custom_call.1} parent=1 // pred_check_branch
      %22 = sbr.rel (0) target = $region21
    $region20: #{tpu_custom_call.1} parent=1 // pred_region
      _
    $region21: #{tpu_custom_call.1} parent=1 // pred_fallthru
      _
    %v23 = vld [vmem:[%s0] sm:$0x1f]
    %v24 = vld [vmem:[%s1] sm:$0xff]
    %v25 = vld [vmem:[%s1 + $0x8] sm:$0xff]
    %v26 = vld [vmem:[%s1 + $0x10] sm:$0xf]
    %v27 = vld [vmem:[%s2] sm:$0xff]
    %v28 = vld [vmem:[%s2 + $0x8] sm:$0xff]
    %v29 = vld [vmem:[%s2 + $0x10] sm:$0xf]
    %v30 = vld [vmem:[%s3] sm:$0xff]
    %v31 = vld [vmem:[%s3 + $0x8] sm:$0xff]
    %v32 = vld [vmem:[%s3 + $0x10] sm:$0xf]
    %v33 = vld [vmem:[#allocation2] sm:$0x1]
    %35 = vset.pattern.permute.xlu0 0
    %36 = vperm.xlu0 %35, %v27
    %v37 = vpop.permute.xlu0 %36
    %40 = vset.pattern.permute.xlu0 0
    %41 = vperm.xlu0 %40, %v28
    %v42 = vpop.permute.xlu0 %41
    %45 = vset.pattern.permute.xlu0 0
    %46 = vperm.xlu0 %45, %v29
    %v47 = vpop.permute.xlu0 %46
    %vm49 = vcmask 39936
    %v51 = vsel %vm49, %v24, 0
    %v54 = vsel %vm49, %v25, 0
    %v57 = vsel %vm49, %v26, 0
    %vm59 = vcmask 1044480
    %v61 = vsel %vm59, %v23, 0
    %63 = vmatprep.subr.mxu0 0.0
    %v64 = vand.u32 %v61, 4294901760
    %65 = vmatpush1.msra.mxu0 %v64
    %66 = vmatprep.subr.mxu0 0.0
    %67 = vmatpush1.msra.mxu0 0.0
    %68 = vmatprep.subr.mxu0 0.0
    %69 = vmatpush1.msra.mxu0 0.0
    %70 = vmatprep.subr.mxu0 0.0
    %71 = vmatpush1.msra.mxu0 0.0
    %72 = vmatprep.subr.mxu0 0.0
    %73 = vmatpush1.msra.mxu0 0.0
    %74 = vmatprep.subr.mxu0 0.0
    %75 = vmatpush1.msra.mxu0 0.0
    %76 = vmatprep.subr.mxu0 0.0
    %77 = vmatpush1.msra.mxu0 0.0
    %78 = vmatprep.subr.mxu0 0.0
    %79 = vmatpush1.msra.mxu0 0.0
    %80 = vmatprep.subr.mxu0 0.0
    %81 = vmatpush1.msra.mxu0 0.0
    %82 = vmatprep.subr.mxu0 0.0
    %83 = vmatpush1.msra.mxu0 0.0
    %84 = vmatprep.subr.mxu0 0.0
    %85 = vmatpush1.msra.mxu0 0.0
    %86 = vmatprep.subr.mxu0 0.0
    %87 = vmatpush1.msra.mxu0 0.0
    %88 = vmatprep.subr.mxu0 0.0
    %89 = vmatpush1.msra.mxu0 0.0
    %90 = vmatprep.subr.mxu0 0.0
    %91 = vmatpush1.msra.mxu0 0.0
    %92 = vmatprep.subr.mxu0 0.0
    %93 = vmatpush1.msra.mxu0 0.0
    %94 = vmatprep.subr.mxu0 0.0
    %95 = vmatpush1.msra.mxu0 0.0
    %96 = vmatprep.subr.mxu0 0.0
    %97 = vmatpush1.msra.mxu0 0.0
    %98 = vmatprep.subr.mxu0 0.0
    %99 = vmatpush1.msra.mxu0 0.0
    %100 = vmatprep.subr.mxu0 0.0
    %101 = vmatpush1.msra.mxu0 0.0
    %102 = vmatprep.subr.mxu0 0.0
    %103 = vmatpush1.msra.mxu0 0.0
    %104 = vmatprep.subr.mxu0 0.0
    %105 = vmatpush1.msra.mxu0 0.0
    %106 = vmatprep.subr.mxu0 0.0
    %107 = vmatpush1.msra.mxu0 0.0
    %108 = vmatprep.subr.mxu0 0.0
    %109 = vmatpush1.msra.mxu0 0.0
    %110 = vmatprep.subr.mxu0 0.0
    %111 = vmatpush1.msra.mxu0 0.0
    %112 = vmatprep.subr.mxu0 0.0
    %113 = vmatpush1.msra.mxu0 0.0
    %114 = vmatprep.subr.mxu0 0.0
    %115 = vmatpush1.msra.mxu0 0.0
    %116 = vmatprep.subr.mxu0 0.0
    %117 = vmatpush1.msra.mxu0 0.0
    %118 = vmatprep.subr.mxu0 0.0
    %119 = vmatpush1.msra.mxu0 0.0
    %120 = vmatprep.subr.mxu0 0.0
    %121 = vmatpush1.msra.mxu0 0.0
    %122 = vmatprep.subr.mxu0 0.0
    %123 = vmatpush1.msra.mxu0 0.0
    %124 = vmatprep.subr.mxu0 0.0
    %125 = vmatpush1.msra.mxu0 0.0
    %126 = vmatprep.subr.mxu0 0.0
    %127 = vmatpush1.msra.mxu0 0.0
    %128 = vmatprep.mubr.f32.mxu0 0.0
    %v129 = vand.u32 %v51, 4294901760
    %v130 = vsub.f32 %v51, %v129
    %v131 = vand.u32 %v130, 4294901760
    %v132 = vsub.f32 %v130, %v131
    %v133 = vand.u32 %v132, 4294901760
    %134 = vmatmul.mubr.f32.gmra.mrb[0].mxu0 %v133
    %v135 = vpop.f32.mrb[0].mxu0
    %v136 = vadd.f32 %v37, %v135
    %v137 = vpop.f32.mrb[0].mxu0
    %138 = vmatprep.mubr.f32.mxu0 0.0
    %v139 = vand.u32 %v54, 4294901760
    %v140 = vsub.f32 %v54, %v139
    %v141 = vand.u32 %v140, 4294901760
    %v142 = vsub.f32 %v140, %v141
    %v143 = vand.u32 %v142, 4294901760
    %144 = vmatmul.mubr.f32.gmra.mrb[0].mxu0 %v143
    %v145 = vpop.f32.mrb[0].mxu0
    %v146 = vadd.f32 %v42, %v145
    %v147 = vpop.f32.mrb[0].mxu0
    %148 = vmatprep.mubr.f32.mxu0 0.0
    %v149 = vand.u32 %v57, 4294901760
    %v150 = vsub.f32 %v57, %v149
    %v151 = vand.u32 %v150, 4294901760
    %v152 = vsub.f32 %v150, %v151
    %v153 = vand.u32 %v152, 4294901760
    %154 = vmatmul.mubr.f32.gmra.mrb[0].mxu0 %v153
    %v155 = vpop.f32.mrb[0].mxu0
    %v156 = vadd.f32 %v47, %v155
    %v157 = vpop.f32.mrb[0].mxu0
    %158 = vdwg.mxu0
    %159 = vmatprep.subr.mxu0 0.0
    %v160 = vand.u32 %v61, 4294901760
    %v161 = vsub.f32 %v61, %v160
    %v162 = vand.u32 %v161, 4294901760
    %v163 = vsub.f32 %v161, %v162
    %v164 = vand.u32 %v163, 4294901760
    %165 = vmatpush1.msra.mxu0 %v164
    %166 = vmatprep.subr.mxu0 0.0
    %167 = vmatpush1.msra.mxu0 0.0
    %168 = vmatprep.subr.mxu0 0.0
    %169 = vmatpush1.msra.mxu0 0.0
    %170 = vmatprep.subr.mxu0 0.0
    %171 = vmatpush1.msra.mxu0 0.0
    %172 = vmatprep.subr.mxu0 0.0
    %173 = vmatpush1.msra.mxu0 0.0
    %174 = vmatprep.subr.mxu0 0.0
    %175 = vmatpush1.msra.mxu0 0.0
    %176 = vmatprep.subr.mxu0 0.0
    %177 = vmatpush1.msra.mxu0 0.0
    %178 = vmatprep.subr.mxu0 0.0
    %179 = vmatpush1.msra.mxu0 0.0
    %180 = vmatprep.subr.mxu0 0.0
    %181 = vmatpush1.msra.mxu0 0.0
    %182 = vmatprep.subr.mxu0 0.0
    %183 = vmatpush1.msra.mxu0 0.0
    %184 = vmatprep.subr.mxu0 0.0
    %185 = vmatpush1.msra.mxu0 0.0
    %186 = vmatprep.subr.mxu0 0.0
    %187 = vmatpush1.msra.mxu0 0.0
    %188 = vmatprep.subr.mxu0 0.0
    %189 = vmatpush1.msra.mxu0 0.0
    %190 = vmatprep.subr.mxu0 0.0
    %191 = vmatpush1.msra.mxu0 0.0
    %192 = vmatprep.subr.mxu0 0.0
    %193 = vmatpush1.msra.mxu0 0.0
    %194 = vmatprep.subr.mxu0 0.0
    %195 = vmatpush1.msra.mxu0 0.0
    %196 = vmatprep.subr.mxu0 0.0
    %197 = vmatpush1.msra.mxu0 0.0
    %198 = vmatprep.subr.mxu0 0.0
    %199 = vmatpush1.msra.mxu0 0.0
    %200 = vmatprep.subr.mxu0 0.0
    %201 = vmatpush1.msra.mxu0 0.0
    %202 = vmatprep.subr.mxu0 0.0
    %203 = vmatpush1.msra.mxu0 0.0
    %204 = vmatprep.subr.mxu0 0.0
    %205 = vmatpush1.msra.mxu0 0.0
    %206 = vmatprep.subr.mxu0 0.0
    %207 = vmatpush1.msra.mxu0 0.0
    %208 = vmatprep.subr.mxu0 0.0
    %209 = vmatpush1.msra.mxu0 0.0
    %210 = vmatprep.subr.mxu0 0.0
    %211 = vmatpush1.msra.mxu0 0.0
    %212 = vmatprep.subr.mxu0 0.0
    %213 = vmatpush1.msra.mxu0 0.0
    %214 = vmatprep.subr.mxu0 0.0
    %215 = vmatpush1.msra.mxu0 0.0
    %216 = vmatprep.subr.mxu0 0.0
    %217 = vmatpush1.msra.mxu0 0.0
    %218 = vmatprep.subr.mxu0 0.0
    %219 = vmatpush1.msra.mxu0 0.0
    %220 = vmatprep.subr.mxu0 0.0
    %221 = vmatpush1.msra.mxu0 0.0
    %222 = vmatprep.subr.mxu0 0.0
    %223 = vmatpush1.msra.mxu0 0.0
    %224 = vmatprep.subr.mxu0 0.0
    %225 = vmatpush1.msra.mxu0 0.0
    %226 = vmatprep.subr.mxu0 0.0
    %227 = vmatpush1.msra.mxu0 0.0
    %228 = vmatprep.mubr.f32.mxu0 0.0
    %v229 = vand.u32 %v51, 4294901760
    %230 = vmatmul.mubr.f32.gmra.mrb[0].mxu0 %v229
    %v231 = vpop.f32.mrb[0].mxu0
    %v232 = vadd.f32 %v136, %v231
    %v233 = vpop.f32.mrb[0].mxu0
    %234 = vmatprep.mubr.f32.mxu0 0.0
    %v235 = vand.u32 %v54, 4294901760
    %236 = vmatmul.mubr.f32.gmra.mrb[0].mxu0 %v235
    %v237 = vpop.f32.mrb[0].mxu0
    %v238 = vadd.f32 %v146, %v237
    %v239 = vpop.f32.mrb[0].mxu0
    %240 = vmatprep.mubr.f32.mxu0 0.0
    %v241 = vand.u32 %v57, 4294901760
    %242 = vmatmul.mubr.f32.gmra.mrb[0].mxu0 %v241
    %v243 = vpop.f32.mrb[0].mxu0
    %v244 = vadd.f32 %v156, %v243
    %v245 = vpop.f32.mrb[0].mxu0
    %246 = vdwg.mxu0
    %247 = vmatprep.subr.mxu0 0.0
    %v248 = vand.u32 %v61, 4294901760
    %v249 = vsub.f32 %v61, %v248
    %250 = vmatpush1.msra.mxu0 %v249
    %251 = vmatprep.subr.mxu0 0.0
    %252 = vmatpush1.msra.mxu0 0.0
    %253 = vmatprep.subr.mxu0 0.0
    %254 = vmatpush1.msra.mxu0 0.0
    %255 = vmatprep.subr.mxu0 0.0
    %256 = vmatpush1.msra.mxu0 0.0
    %257 = vmatprep.subr.mxu0 0.0
    %258 = vmatpush1.msra.mxu0 0.0
    %259 = vmatprep.subr.mxu0 0.0
    %260 = vmatpush1.msra.mxu0 0.0
    %261 = vmatprep.subr.mxu0 0.0
    %262 = vmatpush1.msra.mxu0 0.0
    %263 = vmatprep.subr.mxu0 0.0
    %264 = vmatpush1.msra.mxu0 0.0
    %265 = vmatprep.subr.mxu0 0.0
    %266 = vmatpush1.msra.mxu0 0.0
    %267 = vmatprep.subr.mxu0 0.0
    %268 = vmatpush1.msra.mxu0 0.0
    %269 = vmatprep.subr.mxu0 0.0
    %270 = vmatpush1.msra.mxu0 0.0
    %271 = vmatprep.subr.mxu0 0.0
    %272 = vmatpush1.msra.mxu0 0.0
    %273 = vmatprep.subr.mxu0 0.0
    %274 = vmatpush1.msra.mxu0 0.0
    %275 = vmatprep.subr.mxu0 0.0
    %276 = vmatpush1.msra.mxu0 0.0
    %277 = vmatprep.subr.mxu0 0.0
    %278 = vmatpush1.msra.mxu0 0.0
    %279 = vmatprep.subr.mxu0 0.0
    %280 = vmatpush1.msra.mxu0 0.0
    %281 = vmatprep.subr.mxu0 0.0
    %282 = vmatpush1.msra.mxu0 0.0
    %283 = vmatprep.subr.mxu0 0.0
    %284 = vmatpush1.msra.mxu0 0.0
    %285 = vmatprep.subr.mxu0 0.0
    %286 = vmatpush1.msra.mxu0 0.0
    %287 = vmatprep.subr.mxu0 0.0
    %288 = vmatpush1.msra.mxu0 0.0
    %289 = vmatprep.subr.mxu0 0.0
    %290 = vmatpush1.msra.mxu0 0.0
    %291 = vmatprep.subr.mxu0 0.0
    %292 = vmatpush1.msra.mxu0 0.0
    %293 = vmatprep.subr.mxu0 0.0
    %294 = vmatpush1.msra.mxu0 0.0
    %295 = vmatprep.subr.mxu0 0.0
    %296 = vmatpush1.msra.mxu0 0.0
    %297 = vmatprep.subr.mxu0 0.0
    %298 = vmatpush1.msra.mxu0 0.0
    %299 = vmatprep.subr.mxu0 0.0
    %300 = vmatpush1.msra.mxu0 0.0
    %301 = vmatprep.subr.mxu0 0.0
    %302 = vmatpush1.msra.mxu0 0.0
    %303 = vmatprep.subr.mxu0 0.0
    %304 = vmatpush1.msra.mxu0 0.0
    %305 = vmatprep.subr.mxu0 0.0
    %306 = vmatpush1.msra.mxu0 0.0
    %307 = vmatprep.subr.mxu0 0.0
    %308 = vmatpush1.msra.mxu0 0.0
    %309 = vmatprep.subr.mxu0 0.0
    %310 = vmatpush1.msra.mxu0 0.0
    %311 = vmatprep.subr.mxu0 0.0
    %312 = vmatpush1.msra.mxu0 0.0
    %313 = vmatprep.mubr.f32.mxu0 0.0
    %v314 = vand.u32 %v51, 4294901760
    %v315 = vsub.f32 %v51, %v314
    %316 = vmatmul.mubr.f32.gmra.mrb[0].mxu0 %v315
    %v317 = vpop.f32.mrb[0].mxu0
    %v318 = vadd.f32 %v232, %v317
    %v319 = vpop.f32.mrb[0].mxu0
    %320 = vmatprep.mubr.f32.mxu0 0.0
    %v321 = vand.u32 %v54, 4294901760
    %v322 = vsub.f32 %v54, %v321
    %323 = vmatmul.mubr.f32.gmra.mrb[0].mxu0 %v322
    %v324 = vpop.f32.mrb[0].mxu0
    %v325 = vadd.f32 %v238, %v324
    %v326 = vpop.f32.mrb[0].mxu0
    %327 = vmatprep.mubr.f32.mxu0 0.0
    %v328 = vand.u32 %v57, 4294901760
    %v329 = vsub.f32 %v57, %v328
    %330 = vmatmul.mubr.f32.gmra.mrb[0].mxu0 %v329
    %v331 = vpop.f32.mrb[0].mxu0
    %v332 = vadd.f32 %v244, %v331
    %v333 = vpop.f32.mrb[0].mxu0
    %334 = vdwg.mxu0
    %335 = vmatprep.subr.mxu0 0.0
    %v336 = vand.u32 %v61, 4294901760
    %337 = vmatpush1.msra.mxu0 %v336
    %338 = vmatprep.subr.mxu0 0.0
    %339 = vmatpush1.msra.mxu0 0.0
    %340 = vmatprep.subr.mxu0 0.0
    %341 = vmatpush1.msra.mxu0 0.0
    %342 = vmatprep.subr.mxu0 0.0
    %343 = vmatpush1.msra.mxu0 0.0
    %344 = vmatprep.subr.mxu0 0.0
    %345 = vmatpush1.msra.mxu0 0.0
    %346 = vmatprep.subr.mxu0 0.0
    %347 = vmatpush1.msra.mxu0 0.0
    %348 = vmatprep.subr.mxu0 0.0
    %349 = vmatpush1.msra.mxu0 0.0
    %350 = vmatprep.subr.mxu0 0.0
    %351 = vmatpush1.msra.mxu0 0.0
    %352 = vmatprep.subr.mxu0 0.0
    %353 = vmatpush1.msra.mxu0 0.0
    %354 = vmatprep.subr.mxu0 0.0
    %355 = vmatpush1.msra.mxu0 0.0
    %356 = vmatprep.subr.mxu0 0.0
    %357 = vmatpush1.msra.mxu0 0.0
    %358 = vmatprep.subr.mxu0 0.0
    %359 = vmatpush1.msra.mxu0 0.0
    %360 = vmatprep.subr.mxu0 0.0
    %361 = vmatpush1.msra.mxu0 0.0
    %362 = vmatprep.subr.mxu0 0.0
    %363 = vmatpush1.msra.mxu0 0.0
    %364 = vmatprep.subr.mxu0 0.0
    %365 = vmatpush1.msra.mxu0 0.0
    %366 = vmatprep.subr.mxu0 0.0
    %367 = vmatpush1.msra.mxu0 0.0
    %368 = vmatprep.subr.mxu0 0.0
    %369 = vmatpush1.msra.mxu0 0.0
    %370 = vmatprep.subr.mxu0 0.0
    %371 = vmatpush1.msra.mxu0 0.0
    %372 = vmatprep.subr.mxu0 0.0
    %373 = vmatpush1.msra.mxu0 0.0
    %374 = vmatprep.subr.mxu0 0.0
    %375 = vmatpush1.msra.mxu0 0.0
    %376 = vmatprep.subr.mxu0 0.0
    %377 = vmatpush1.msra.mxu0 0.0
    %378 = vmatprep.subr.mxu0 0.0
    %379 = vmatpush1.msra.mxu0 0.0
    %380 = vmatprep.subr.mxu0 0.0
    %381 = vmatpush1.msra.mxu0 0.0
    %382 = vmatprep.subr.mxu0 0.0
    %383 = vmatpush1.msra.mxu0 0.0
    %384 = vmatprep.subr.mxu0 0.0
    %385 = vmatpush1.msra.mxu0 0.0
    %386 = vmatprep.subr.mxu0 0.0
    %387 = vmatpush1.msra.mxu0 0.0
    %388 = vmatprep.subr.mxu0 0.0
    %389 = vmatpush1.msra.mxu0 0.0
    %390 = vmatprep.subr.mxu0 0.0
    %391 = vmatpush1.msra.mxu0 0.0
    %392 = vmatprep.subr.mxu0 0.0
    %393 = vmatpush1.msra.mxu0 0.0
    %394 = vmatprep.subr.mxu0 0.0
    %395 = vmatpush1.msra.mxu0 0.0
    %396 = vmatprep.subr.mxu0 0.0
    %397 = vmatpush1.msra.mxu0 0.0
    %398 = vmatprep.subr.mxu0 0.0
    %399 = vmatpush1.msra.mxu0 0.0
    %400 = vmatprep.mubr.f32.mxu0 0.0
    %v401 = vand.u32 %v51, 4294901760
    %v402 = vsub.f32 %v51, %v401
    %v403 = vand.u32 %v402, 4294901760
    %404 = vmatmul.mubr.f32.gmra.mrb[0].mxu0 %v403
    %v405 = vpop.f32.mrb[0].mxu0
    %v406 = vadd.f32 %v318, %v405
    %v407 = vpop.f32.mrb[0].mxu0
    %408 = vmatprep.mubr.f32.mxu0 0.0
    %v409 = vand.u32 %v54, 4294901760
    %v410 = vsub.f32 %v54, %v409
    %v411 = vand.u32 %v410, 4294901760
    %412 = vmatmul.mubr.f32.gmra.mrb[0].mxu0 %v411
    %v413 = vpop.f32.mrb[0].mxu0
    %v414 = vadd.f32 %v325, %v413
    %v415 = vpop.f32.mrb[0].mxu0
    %416 = vmatprep.mubr.f32.mxu0 0.0
    %v417 = vand.u32 %v57, 4294901760
    %v418 = vsub.f32 %v57, %v417
    %v419 = vand.u32 %v418, 4294901760
    %420 = vmatmul.mubr.f32.gmra.mrb[0].mxu0 %v419
    %v421 = vpop.f32.mrb[0].mxu0
    %v422 = vadd.f32 %v332, %v421
    %v423 = vpop.f32.mrb[0].mxu0
    %424 = vdwg.mxu0
    %425 = vmatprep.subr.mxu0 0.0
    %v426 = vand.u32 %v61, 4294901760
    %v427 = vsub.f32 %v61, %v426
    %v428 = vand.u32 %v427, 4294901760
    %429 = vmatpush1.msra.mxu0 %v428
    %430 = vmatprep.subr.mxu0 0.0
    %431 = vmatpush1.msra.mxu0 0.0
    %432 = vmatprep.subr.mxu0 0.0
    %433 = vmatpush1.msra.mxu0 0.0
    %434 = vmatprep.subr.mxu0 0.0
    %435 = vmatpush1.msra.mxu0 0.0
    %436 = vmatprep.subr.mxu0 0.0
    %437 = vmatpush1.msra.mxu0 0.0
    %438 = vmatprep.subr.mxu0 0.0
    %439 = vmatpush1.msra.mxu0 0.0
    %440 = vmatprep.subr.mxu0 0.0
    %441 = vmatpush1.msra.mxu0 0.0
    %442 = vmatprep.subr.mxu0 0.0
    %443 = vmatpush1.msra.mxu0 0.0
    %444 = vmatprep.subr.mxu0 0.0
    %445 = vmatpush1.msra.mxu0 0.0
    %446 = vmatprep.subr.mxu0 0.0
    %447 = vmatpush1.msra.mxu0 0.0
    %448 = vmatprep.subr.mxu0 0.0
    %449 = vmatpush1.msra.mxu0 0.0
    %450 = vmatprep.subr.mxu0 0.0
    %451 = vmatpush1.msra.mxu0 0.0
    %452 = vmatprep.subr.mxu0 0.0
    %453 = vmatpush1.msra.mxu0 0.0
    %454 = vmatprep.subr.mxu0 0.0
    %455 = vmatpush1.msra.mxu0 0.0
    %456 = vmatprep.subr.mxu0 0.0
    %457 = vmatpush1.msra.mxu0 0.0
    %458 = vmatprep.subr.mxu0 0.0
    %459 = vmatpush1.msra.mxu0 0.0
    %460 = vmatprep.subr.mxu0 0.0
    %461 = vmatpush1.msra.mxu0 0.0
    %462 = vmatprep.subr.mxu0 0.0
    %463 = vmatpush1.msra.mxu0 0.0
    %464 = vmatprep.subr.mxu0 0.0
    %465 = vmatpush1.msra.mxu0 0.0
    %466 = vmatprep.subr.mxu0 0.0
    %467 = vmatpush1.msra.mxu0 0.0
    %468 = vmatprep.subr.mxu0 0.0
    %469 = vmatpush1.msra.mxu0 0.0
    %470 = vmatprep.subr.mxu0 0.0
    %471 = vmatpush1.msra.mxu0 0.0
    %472 = vmatprep.subr.mxu0 0.0
    %473 = vmatpush1.msra.mxu0 0.0
    %474 = vmatprep.subr.mxu0 0.0
    %475 = vmatpush1.msra.mxu0 0.0
    %476 = vmatprep.subr.mxu0 0.0
    %477 = vmatpush1.msra.mxu0 0.0
    %478 = vmatprep.subr.mxu0 0.0
    %479 = vmatpush1.msra.mxu0 0.0
    %480 = vmatprep.subr.mxu0 0.0
    %481 = vmatpush1.msra.mxu0 0.0
    %482 = vmatprep.subr.mxu0 0.0
    %483 = vmatpush1.msra.mxu0 0.0
    %484 = vmatprep.subr.mxu0 0.0
    %485 = vmatpush1.msra.mxu0 0.0
    %486 = vmatprep.subr.mxu0 0.0
    %487 = vmatpush1.msra.mxu0 0.0
    %488 = vmatprep.subr.mxu0 0.0
    %489 = vmatpush1.msra.mxu0 0.0
    %490 = vmatprep.subr.mxu0 0.0
    %491 = vmatpush1.msra.mxu0 0.0
    %492 = vmatprep.mubr.f32.mxu0 0.0
    %v493 = vand.u32 %v51, 4294901760
    %494 = vmatmul.mubr.f32.gmra.mrb[0].mxu0 %v493
    %v495 = vpop.f32.mrb[0].mxu0
    %v496 = vadd.f32 %v406, %v495
    %v497 = vpop.f32.mrb[0].mxu0
    %498 = vmatprep.mubr.f32.mxu0 0.0
    %v499 = vand.u32 %v54, 4294901760
    %500 = vmatmul.mubr.f32.gmra.mrb[0].mxu0 %v499
    %v501 = vpop.f32.mrb[0].mxu0
    %v502 = vadd.f32 %v414, %v501
    %v503 = vpop.f32.mrb[0].mxu0
    %504 = vmatprep.mubr.f32.mxu0 0.0
    %v505 = vand.u32 %v57, 4294901760
    %506 = vmatmul.mubr.f32.gmra.mrb[0].mxu0 %v505
    %v507 = vpop.f32.mrb[0].mxu0
    %v508 = vadd.f32 %v422, %v507
    %v509 = vpop.f32.mrb[0].mxu0
    %510 = vdwg.mxu0
    %511 = vmatprep.subr.mxu0 0.0
    %v512 = vand.u32 %v61, 4294901760
    %513 = vmatpush1.msra.mxu0 %v512
    %514 = vmatprep.subr.mxu0 0.0
    %515 = vmatpush1.msra.mxu0 0.0
    %516 = vmatprep.subr.mxu0 0.0
    %517 = vmatpush1.msra.mxu0 0.0
    %518 = vmatprep.subr.mxu0 0.0
    %519 = vmatpush1.msra.mxu0 0.0
    %520 = vmatprep.subr.mxu0 0.0
    %521 = vmatpush1.msra.mxu0 0.0
    %522 = vmatprep.subr.mxu0 0.0
    %523 = vmatpush1.msra.mxu0 0.0
    %524 = vmatprep.subr.mxu0 0.0
    %525 = vmatpush1.msra.mxu0 0.0
    %526 = vmatprep.subr.mxu0 0.0
    %527 = vmatpush1.msra.mxu0 0.0
    %528 = vmatprep.subr.mxu0 0.0
    %529 = vmatpush1.msra.mxu0 0.0
    %530 = vmatprep.subr.mxu0 0.0
    %531 = vmatpush1.msra.mxu0 0.0
    %532 = vmatprep.subr.mxu0 0.0
    %533 = vmatpush1.msra.mxu0 0.0
    %534 = vmatprep.subr.mxu0 0.0
    %535 = vmatpush1.msra.mxu0 0.0
    %536 = vmatprep.subr.mxu0 0.0
    %537 = vmatpush1.msra.mxu0 0.0
    %538 = vmatprep.subr.mxu0 0.0
    %539 = vmatpush1.msra.mxu0 0.0
    %540 = vmatprep.subr.mxu0 0.0
    %541 = vmatpush1.msra.mxu0 0.0
    %542 = vmatprep.subr.mxu0 0.0
    %543 = vmatpush1.msra.mxu0 0.0
    %544 = vmatprep.subr.mxu0 0.0
    %545 = vmatpush1.msra.mxu0 0.0
    %546 = vmatprep.subr.mxu0 0.0
    %547 = vmatpush1.msra.mxu0 0.0
    %548 = vmatprep.subr.mxu0 0.0
    %549 = vmatpush1.msra.mxu0 0.0
    %550 = vmatprep.subr.mxu0 0.0
    %551 = vmatpush1.msra.mxu0 0.0
    %552 = vmatprep.subr.mxu0 0.0
    %553 = vmatpush1.msra.mxu0 0.0
    %554 = vmatprep.subr.mxu0 0.0
    %555 = vmatpush1.msra.mxu0 0.0
    %556 = vmatprep.subr.mxu0 0.0
    %557 = vmatpush1.msra.mxu0 0.0
    %558 = vmatprep.subr.mxu0 0.0
    %559 = vmatpush1.msra.mxu0 0.0
    %560 = vmatprep.subr.mxu0 0.0
    %561 = vmatpush1.msra.mxu0 0.0
    %562 = vmatprep.subr.mxu0 0.0
    %563 = vmatpush1.msra.mxu0 0.0
    %564 = vmatprep.subr.mxu0 0.0
    %565 = vmatpush1.msra.mxu0 0.0
    %566 = vmatprep.subr.mxu0 0.0
    %567 = vmatpush1.msra.mxu0 0.0
    %568 = vmatprep.subr.mxu0 0.0
    %569 = vmatpush1.msra.mxu0 0.0
    %570 = vmatprep.subr.mxu0 0.0
    %571 = vmatpush1.msra.mxu0 0.0
    %572 = vmatprep.subr.mxu0 0.0
    %573 = vmatpush1.msra.mxu0 0.0
    %574 = vmatprep.subr.mxu0 0.0
    %575 = vmatpush1.msra.mxu0 0.0
    %576 = vmatprep.mubr.f32.mxu0 0.0
    %v577 = vand.u32 %v51, 4294901760
    %578 = vmatmul.mubr.f32.gmra.mrb[0].mxu0 %v577
    %v579 = vpop.f32.mrb[0].mxu0
    %v580 = vadd.f32 %v496, %v579
    %v581 = vpop.f32.mrb[0].mxu0
    %582 = vmatprep.mubr.f32.mxu0 0.0
    %v583 = vand.u32 %v54, 4294901760
    %584 = vmatmul.mubr.f32.gmra.mrb[0].mxu0 %v583
    %v585 = vpop.f32.mrb[0].mxu0
    %v586 = vadd.f32 %v502, %v585
    %v587 = vpop.f32.mrb[0].mxu0
    %588 = vmatprep.mubr.f32.mxu0 0.0
    %v589 = vand.u32 %v57, 4294901760
    %590 = vmatmul.mubr.f32.gmra.mrb[0].mxu0 %v589
    %v591 = vpop.f32.mrb[0].mxu0
    %v592 = vadd.f32 %v508, %v591
    %v593 = vpop.f32.mrb[0].mxu0
    %594 = vdwg.mxu0
    %v595 = vmax.f32 %v580, 0.0
    %v596 = vmax.f32 %v586, 0.0
    %v597 = vmax.f32 %v592, 0.0
    %599 = vset.pattern.permute.xlu0 0
    %600 = vperm.xlu0 %599, %v30
    %v601 = vpop.permute.xlu0 %600
    %604 = vset.pattern.permute.xlu0 0
    %605 = vperm.xlu0 %604, %v31
    %v606 = vpop.permute.xlu0 %605
    %609 = vset.pattern.permute.xlu0 0
    %610 = vperm.xlu0 %609, %v32
    %v611 = vpop.permute.xlu0 %610
    %v613 = vmul.f32 %v601, %v595
    %v614 = vmul.f32 %v606, %v596
    %v615 = vmul.f32 %v611, %v597
    %v616 = vadd.f32 %v613, %v614
    %vm617 = vcmask 1043456
    %v618 = vsel %vm617, %v615, 0.0
    %v619 = vadd.f32 %v616, %v618
    %v620 = vrot.slane %v619, 4
    %v621 = vadd.f32 %v619, %v620
    %v622 = vrot.slane %v621, 2
    %v623 = vadd.f32 %v621, %v622
    %v624 = vrot.slane %v623, 1
    %v625 = vadd.f32 %v623, %v624
    %627 = vset.pattern.permute.xlu0 0
    %628 = vperm.xlu0 %627, %v33
    %v629 = vpop.permute.xlu0 %628
    %v631 = vlaneseq
    %v632 = vshrl.u32 %v631, 7
    %v633 = vsub.s32 0, %v632
    %v634 = vrot.slane %v629, %v633
    %v635 = vadd.f32 %v625, %v634
    %636 = vst [vmem:[#allocation3] sm:$0x1] %v635
    // Predicated region
    $region22: #{tpu_custom_call.1} parent=1 // pred_check
      _
    $region23: #{tpu_custom_call.1} parent=1 // pred_check_branch
      %638 = sbr.rel (0) target = $region25
    $region24: #{tpu_custom_call.1} parent=1 // pred_region
      %s640 = ssub.s32 16, 16
      %641 = vsyncadd [#allocation4], %s640
      %s643 = sshll.u32 [#allocation3], 4
      %s644 = int_to_ptr.vmem [resolvable:$true] %s643
      %646 = dma.vmem_to_hbm [thread:$0]  %s644, 16, %s5, [#allocation4]
    $region25: #{tpu_custom_call.1} parent=1 // pred_fallthru
      _
    // Predicated region
    $region26: #{tpu_custom_call.1} parent=1 // pred_check
      _
    $region27: #{tpu_custom_call.1} parent=1 // pred_check_branch
      %648 = sbr.rel (0) target = $region29
    $region28: #{tpu_custom_call.1} parent=1 // pred_region
      %649 = dma.done [#allocation4], 16
    $region29: #{tpu_custom_call.1} parent=1 // pred_fallthru
      _
    %650 = vsyncpa [#allocation4], 1

</llo_original>
